<compile_context>
chip_gen: v5e
topology: v5e:2x2
jax: 0.10.0
libtpu: 0.0.40
codegen_flags: <defaults>
</compile_context>

<pallas_src>
import jax
import jax.numpy as jnp
from jax.experimental import pallas as pl
from jax.experimental.pallas import tpu as pltpu

LANE = 128  # lane width; also the hidden size of this MLP


def _round_up(n, m):
    return (n + m - 1) // m * m


def _cdiv(a, b):
    return (a + b - 1) // b


def dqn_mlp_kernel(x_ref, w1_ref, b1_ref, w2_ref, b2_ref, w3_ref, b3_ref, o_ref):
    # fc1: x arrives f32 and is cast to bf16 here (VPU op, hidden under MXU/DMA slack);
    # MXU inputs bf16, accumulation f32; bias-add / ReLU stay f32 (v5e-safe elementwise path).
    x = x_ref[...].astype(jnp.bfloat16)
    h1 = jnp.dot(x, w1_ref[...], preferred_element_type=jnp.float32)
    h1 = jnp.maximum(h1 + b1_ref[...], 0.0)
    # fc2
    h2 = jnp.dot(h1.astype(jnp.bfloat16), w2_ref[...], preferred_element_type=jnp.float32)
    h2 = jnp.maximum(h2 + b2_ref[...], 0.0)
    # fc3 (output columns zero-padded to a lane-dense 128-wide slab -> unmasked stores)
    out = jnp.dot(h2.astype(jnp.bfloat16), w3_ref[...], preferred_element_type=jnp.float32)
    o_ref[...] = (out + b3_ref[...]).astype(o_ref.dtype)


def prepare_params(params):
    """One-time parameter prep (call at init / target-network sync, NOT per forward).

    bf16 MXU weights; f32 biases; fc3 weight/bias zero-padded A -> multiple of 128 so the
    kernel's final store is a full-lane slab (padded columns are exact zeros+bias, sliced
    away by the wrapper).
    """
    H = params["w1"].shape[1]
    A = params["w3"].shape[1]
    A_pad = _round_up(A, LANE)
    w3p = (jnp.zeros((H, A_pad), jnp.float32)
           .at[:, :A].set(params["w3"].astype(jnp.float32))
           .astype(jnp.bfloat16))
    b3p = (jnp.zeros((1, A_pad), jnp.float32)
           .at[:, :A].set(params["b3"].astype(jnp.float32)))
    return {
        "w1": params["w1"].astype(jnp.bfloat16),
        "b1": params["b1"].astype(jnp.float32),
        "w2": params["w2"].astype(jnp.bfloat16),
        "b2": params["b2"].astype(jnp.float32),
        "w3": w3p,
        "b3": b3p,
    }


def high_level_dqn_forward(x, prep, *, num_actions, batch_tile=1024,
                           out_dtype=jnp.bfloat16):
    """x: (B, input_dim) f32.  prep: output of prepare_params().

    Returns (B, num_actions) in out_dtype.  For the latency-critical B~8 action-selection
    path, jit this together with the consumer (argmax / loss) so the final slice fuses.
    """
    B, Kin = x.shape
    H = prep["w1"].shape[1]
    A_pad = prep["w3"].shape[1]
    assert prep["w1"].shape[0] == Kin

    # --- Tight batch tiling ------------------------------------------------------------
    # Pick the tile count first, then a multiple-of-16 tile that packs B with minimal
    # padding (avoids up-to-TB-1 wasted rows of FLOPs/DMA/writeback).
    n_tiles = max(1, _cdiv(B, batch_tile))
    if n_tiles == 1 and B >= 256:
        # v7x has 2 TensorCores: keep >=2 batch tiles when there is enough work to split.
        n_tiles = 2
    TB = _round_up(max(_cdiv(B, n_tiles), 1), 16)
    B_pad = n_tiles * TB

    # Only pad when the last tile is partial; no dtype conversion in the wrapper.
    x_p = x if B_pad == B else jnp.pad(x, ((0, B_pad - B), (0, 0)))

    grid = (n_tiles,)
    const = lambda i: (0, 0)  # weights/biases resident across the batch grid (DMA'd once)

    out_bytes = jnp.dtype(out_dtype).itemsize
    flops = 2 * B_pad * (Kin * H + H * H + H * A_pad)
    bytes_accessed = (
        B_pad * Kin * 4                                               # f32 x in
        + (prep["w1"].size + prep["w2"].size + prep["w3"].size) * 2   # bf16 weights (once)
        + (prep["b1"].size + prep["b2"].size + prep["b3"].size) * 4   # f32 biases (once)
        + B_pad * A_pad * out_bytes                                   # output slab
    )

    # Scoped-VMEM guard (v5e default is 16 MiB): only raise the limit for very large tiles.
    vmem_est = (
        2 * TB * Kin * 4                      # double-buffered x tiles (f32)
        + 2 * TB * A_pad * out_bytes          # double-buffered output tiles
        + (Kin * H + H * H + H * A_pad) * 2   # resident bf16 weights
        + (3 * H + A_pad) * 4                 # resident f32 biases
        + 6 * TB * H * 4                      # in-body f32/bf16 temporaries (rough)
    )
    vmem_limit = int(min(100 << 20, 2 * vmem_est)) if vmem_est > (12 << 20) else None

    out_pad = pl.pallas_call(
        dqn_mlp_kernel,
        out_shape=jax.ShapeDtypeStruct((B_pad, A_pad), out_dtype),
        grid=grid,
        in_specs=[
            pl.BlockSpec((TB, Kin), lambda i: (i, 0)),   # x streams per batch tile
            pl.BlockSpec((Kin, H), const),
            pl.BlockSpec((1, H), const),
            pl.BlockSpec((H, H), const),
            pl.BlockSpec((1, H), const),
            pl.BlockSpec((H, A_pad), const),
            pl.BlockSpec((1, A_pad), const),
        ],
        out_specs=pl.BlockSpec((TB, A_pad), lambda i: (i, 0)),
        compiler_params=pltpu.CompilerParams(
            dimension_semantics=("parallel",),   # batch tiles independent; v7x shards TCs
            vmem_limit_bytes=vmem_limit,
        ),
        cost_estimate=pl.CostEstimate(
            flops=flops, transcendentals=0, bytes_accessed=bytes_accessed),
    )(x_p, prep["w1"], prep["b1"], prep["w2"], prep["b2"], prep["w3"], prep["b3"])

    return out_pad[:B, :num_actions]


def init_params(key, input_dim, hidden, actions):
    """Deterministic synthetic init (mirrors nn.Linear shapes; weights stored as (in, out))."""
    ks = jax.random.split(key, 6)

    def lin(kw, kb, fan_in, fan_out):
        bound = 1.0 / jnp.sqrt(fan_in)
        w = jax.random.uniform(kw, (fan_in, fan_out), jnp.float32, -bound, bound)
        b = jax.random.uniform(kb, (1, fan_out), jnp.float32, -bound, bound)
        return w, b

    w1, b1 = lin(ks[0], ks[1], input_dim, hidden)
    w2, b2 = lin(ks[2], ks[3], hidden, hidden)
    w3, b3 = lin(ks[4], ks[5], hidden, actions)
    return {"w1": w1, "b1": b1, "w2": w2, "b2": b2, "w3": w3, "b3": b3}


def reference_forward(x, p):
    """Reference with the same bf16-input / f32-accumulation discipline as the kernel."""
    bf = jnp.bfloat16
    h1 = jnp.maximum(
        jnp.dot(x.astype(bf), p["w1"].astype(bf), preferred_element_type=jnp.float32)
        + p["b1"], 0.0)
    h2 = jnp.maximum(
        jnp.dot(h1.astype(bf), p["w2"].astype(bf), preferred_element_type=jnp.float32)
        + p["b2"], 0.0)
    return (jnp.dot(h2.astype(bf), p["w3"].astype(bf), preferred_element_type=jnp.float32)
            + p["b3"])


if __name__ == "__main__":
    key = jax.random.PRNGKey(0)
    k_x, k_p = jax.random.split(key)

    batch = 8
    input_dim = 32
    hidden = 128
    high_level_actions = 8

    x = jax.random.normal(k_x, (batch, input_dim), jnp.float32)
    params = init_params(k_p, input_dim, hidden, high_level_actions)
    prep = prepare_params(params)   # one-time: hoisted out of the forward path

    # Default (bf16 output slab) and f32-output variants; jit so the final slice fuses
    # with any downstream consumer.
    fwd_bf16 = jax.jit(lambda xx: high_level_dqn_forward(
        xx, prep, num_actions=high_level_actions))
    fwd_f32 = jax.jit(lambda xx: high_level_dqn_forward(
        xx, prep, num_actions=high_level_actions, out_dtype=jnp.float32))

    out_bf16 = jax.block_until_ready(fwd_bf16(x))
    out_f32 = jax.block_until_ready(fwd_f32(x))

    ref = reference_forward(x, params)
    assert out_bf16.shape == (batch, high_level_actions)
    assert out_f32.shape == (batch, high_level_actions)
    assert jnp.allclose(out_f32, ref, atol=2e-3, rtol=2e-3), "f32 output mismatch vs reference"
    assert jnp.allclose(out_bf16.astype(jnp.float32), ref, atol=2e-2, rtol=2e-2), \
        "bf16 output mismatch vs reference"

    print("KERNEL_OK")
</pallas_src>

<mosaic_0001>
module attributes {stable_mosaic.version = 11 : i64} {
  func.func @dqn_mlp_kernel(%arg0: i32, %arg1: memref<16x32xf32, #tpu.memory_space<vmem>>, %arg2: memref<32x128xbf16, #tpu.memory_space<vmem>>, %arg3: memref<1x128xf32, #tpu.memory_space<vmem>>, %arg4: memref<128x128xbf16, #tpu.memory_space<vmem>>, %arg5: memref<1x128xf32, #tpu.memory_space<vmem>>, %arg6: memref<128x128xbf16, #tpu.memory_space<vmem>>, %arg7: memref<1x128xf32, #tpu.memory_space<vmem>>, %arg8: memref<16x128xbf16, #tpu.memory_space<vmem>>) attributes {dimension_semantics = [#tpu.dimension_semantics<parallel>], iteration_bounds = array<i64: 1>, scalar_prefetch = 0 : i64, scratch_operands = 0 : i64, tpu.core_type = #tpu.core_type<tc>, window_params = [{transform_indices = @transform_0, window_bounds = array<i64: 16, 32>}, {pipeline_mode = #tpu.pipeline_mode<synchronous>, transform_indices = @transform_1, window_bounds = array<i64: 32, 128>}, {pipeline_mode = #tpu.pipeline_mode<synchronous>, transform_indices = @transform_2, window_bounds = array<i64: 1, 128>}, {pipeline_mode = #tpu.pipeline_mode<synchronous>, transform_indices = @transform_3, window_bounds = array<i64: 128, 128>}, {pipeline_mode = #tpu.pipeline_mode<synchronous>, transform_indices = @transform_4, window_bounds = array<i64: 1, 128>}, {pipeline_mode = #tpu.pipeline_mode<synchronous>, transform_indices = @transform_5, window_bounds = array<i64: 128, 128>}, {pipeline_mode = #tpu.pipeline_mode<synchronous>, transform_indices = @transform_6, window_bounds = array<i64: 1, 128>}, {transform_indices = @transform_7, window_bounds = array<i64: 16, 128>}]} {
    %c0 = arith.constant 0 : index
    %c0_0 = arith.constant 0 : index
    %0 = vector.load %arg1[%c0, %c0_0] : memref<16x32xf32, #tpu.memory_space<vmem>>, vector<16x32xf32>
    %1 = arith.truncf %0 : vector<16x32xf32> to vector<16x32xbf16>
    %c0_1 = arith.constant 0 : index
    %c0_2 = arith.constant 0 : index
    %2 = vector.load %arg2[%c0_1, %c0_2] : memref<32x128xbf16, #tpu.memory_space<vmem>>, vector<32x128xbf16>
    %cst = arith.constant dense<0.000000e+00> : vector<16x128xf32>
    %3 = tpu.matmul %1, %2, %cst {dimension_numbers = #tpu.dot_dimension_numbers<[1], [0], [0], [1], [0, 0, 1, 1], [], []>} : vector<16x32xbf16>, vector<32x128xbf16>, vector<16x128xf32> -> vector<16x128xf32>
    %c0_3 = arith.constant 0 : index
    %c0_4 = arith.constant 0 : index
    %4 = vector.load %arg3[%c0_3, %c0_4] : memref<1x128xf32, #tpu.memory_space<vmem>>, vector<1x128xf32>
    %5 = vector.broadcast %4 : vector<1x128xf32> to vector<16x128xf32>
    %6 = arith.addf %3, %5 : vector<16x128xf32>
    %cst_5 = arith.constant 0.000000e+00 : f32
    %7 = vector.broadcast %cst_5 : f32 to vector<16x128xf32>
    %8 = arith.maximumf %6, %7 : vector<16x128xf32>
    %9 = arith.truncf %8 : vector<16x128xf32> to vector<16x128xbf16>
    %c0_6 = arith.constant 0 : index
    %c0_7 = arith.constant 0 : index
    %10 = vector.load %arg4[%c0_6, %c0_7] : memref<128x128xbf16, #tpu.memory_space<vmem>>, vector<128x128xbf16>
    %cst_8 = arith.constant dense<0.000000e+00> : vector<16x128xf32>
    %11 = tpu.matmul %9, %10, %cst_8 {dimension_numbers = #tpu.dot_dimension_numbers<[1], [0], [0], [1], [0, 0, 1, 1], [], []>} : vector<16x128xbf16>, vector<128x128xbf16>, vector<16x128xf32> -> vector<16x128xf32>
    %c0_9 = arith.constant 0 : index
    %c0_10 = arith.constant 0 : index
    %12 = vector.load %arg5[%c0_9, %c0_10] : memref<1x128xf32, #tpu.memory_space<vmem>>, vector<1x128xf32>
    %13 = vector.broadcast %12 : vector<1x128xf32> to vector<16x128xf32>
    %14 = arith.addf %11, %13 : vector<16x128xf32>
    %cst_11 = arith.constant 0.000000e+00 : f32
    %15 = vector.broadcast %cst_11 : f32 to vector<16x128xf32>
    %16 = arith.maximumf %14, %15 : vector<16x128xf32>
    %17 = arith.truncf %16 : vector<16x128xf32> to vector<16x128xbf16>
    %c0_12 = arith.constant 0 : index
    %c0_13 = arith.constant 0 : index
    %18 = vector.load %arg6[%c0_12, %c0_13] : memref<128x128xbf16, #tpu.memory_space<vmem>>, vector<128x128xbf16>
    %cst_14 = arith.constant dense<0.000000e+00> : vector<16x128xf32>
    %19 = tpu.matmul %17, %18, %cst_14 {dimension_numbers = #tpu.dot_dimension_numbers<[1], [0], [0], [1], [0, 0, 1, 1], [], []>} : vector<16x128xbf16>, vector<128x128xbf16>, vector<16x128xf32> -> vector<16x128xf32>
    %c0_15 = arith.constant 0 : index
    %c0_16 = arith.constant 0 : index
    %20 = vector.load %arg7[%c0_15, %c0_16] : memref<1x128xf32, #tpu.memory_space<vmem>>, vector<1x128xf32>
    %21 = vector.broadcast %20 : vector<1x128xf32> to vector<16x128xf32>
    %22 = arith.addf %19, %21 : vector<16x128xf32>
    %23 = arith.truncf %22 : vector<16x128xf32> to vector<16x128xbf16>
    %c0_17 = arith.constant 0 : index
    %c0_18 = arith.constant 0 : index
    %24 = vector.load %arg8[%c0_17, %c0_18] : memref<16x128xbf16, #tpu.memory_space<vmem>>, vector<16x128xbf16>
    tpu.vector_store %arg8[%c0_17, %c0_18], %23 {strides = array<i32>} : memref<16x128xbf16, #tpu.memory_space<vmem>>, vector<16x128xbf16>,
    return
  }
  func.func @transform_0(%arg0: i32) -> (i32, i32) {
    %c0_i32 = arith.constant 0 : i32
    %c0_i32_0 = arith.constant 0 : i32
    return %arg0, %c0_i32 : i32, i32
  }
  func.func @transform_1(%arg0: i32) -> (i32, i32) {
    %c0_i32 = arith.constant 0 : i32
    %c0_i32_0 = arith.constant 0 : i32
    %c0_i32_1 = arith.constant 0 : i32
    return %c0_i32, %c0_i32_0 : i32, i32
  }
  func.func @transform_2(%arg0: i32) -> (i32, i32) {
    %c0_i32 = arith.constant 0 : i32
    %c0_i32_0 = arith.constant 0 : i32
    %c0_i32_1 = arith.constant 0 : i32
    return %c0_i32, %c0_i32_0 : i32, i32
  }
  func.func @transform_3(%arg0: i32) -> (i32, i32) {
    %c0_i32 = arith.constant 0 : i32
    %c0_i32_0 = arith.constant 0 : i32
    %c0_i32_1 = arith.constant 0 : i32
    return %c0_i32, %c0_i32_0 : i32, i32
  }
  func.func @transform_4(%arg0: i32) -> (i32, i32) {
    %c0_i32 = arith.constant 0 : i32
    %c0_i32_0 = arith.constant 0 : i32
    %c0_i32_1 = arith.constant 0 : i32
    return %c0_i32, %c0_i32_0 : i32, i32
  }
  func.func @transform_5(%arg0: i32) -> (i32, i32) {
    %c0_i32 = arith.constant 0 : i32
    %c0_i32_0 = arith.constant 0 : i32
    %c0_i32_1 = arith.constant 0 : i32
    return %c0_i32, %c0_i32_0 : i32, i32
  }
  func.func @transform_6(%arg0: i32) -> (i32, i32) {
    %c0_i32 = arith.constant 0 : i32
    %c0_i32_0 = arith.constant 0 : i32
    %c0_i32_1 = arith.constant 0 : i32
    return %c0_i32, %c0_i32_0 : i32, i32
  }
  func.func @transform_7(%arg0: i32) -> (i32, i32) {
    %c0_i32 = arith.constant 0 : i32
    %c0_i32_0 = arith.constant 0 : i32
    return %arg0, %c0_i32 : i32, i32
  }
}

</mosaic_0001>

<llo_original>
// kernel: _lambda_.1
$region0: #{_lambda_.1}
  #allocation0 [shape = 'u32[]', space=smem, size = 0x4, offset = 0x4, fixed_abs, tag = 'smem constant byte address 0x4 - core index']
  #allocation1 [shape = 'u32[72,128]{1,0:T(1,128)}', space=vmem, size = 0x9000, scoped, tag = 'internal scratch']
  %s0 = inlined_call_operand.vmem [shape: f32[16,32], index: 0, kind: input, shape index: {}]
  %s1 = inlined_call_operand.vmem [shape: bf16[32,128], index: 1, kind: input, shape index: {}]
  %s2 = inlined_call_operand.vmem [shape: f32[1,128], index: 2, kind: input, shape index: {}]
  %s3 = inlined_call_operand.hbm [shape: bf16[128,128], index: 3, kind: input, shape index: {}]
  %s4 = inlined_call_operand.vmem [shape: f32[1,128], index: 4, kind: input, shape index: {}]
  %s5 = inlined_call_operand.hbm [shape: bf16[128,128], index: 5, kind: input, shape index: {}]
  %s6 = inlined_call_operand.vmem [shape: f32[1,128], index: 6, kind: input, shape index: {}]
  %s7 = inlined_call_operand.vmem [shape: bf16[16,128], index: 7, kind: output, shape index: {}]
  %s8 = sld [smem:[#allocation0]]
  $region46: #{_lambda_.1} parent=0
    _
  %s10 = ssub.s32 1, %s8
  %s11 = scalar_select 0, %s10, %s8
  $region1: #{_lambda_.1} parent=0
    #allocation2 [shape = 'u8[32768]{0}', space=vmem, size = 0x8000, scoped, tag = 'input window, operand 3, single buffered']
    #allocation3 [shape = 's32[1]{0}', space=sflag, size = 0x4, scoped, tag = 'scoped memory for _lambda_.1']
    #allocation4 [shape = 'u8[32768]{0}', space=vmem, size = 0x8000, scoped, tag = 'input window, operand 5, single buffered']
    #allocation5 [shape = 's32[1]{0}', space=sflag, size = 0x4, scoped, tag = 'scoped memory for _lambda_.1']
    %12 = vsyncpa [#allocation3], 0
    %13 = vsyncpa [#allocation5], 0
    // Predicated region
    $region2: #{_lambda_.1} parent=1 // pred_check
      _
    $region3: #{_lambda_.1} parent=1 // pred_check_branch
      %15 = sbr.rel (0) target = $region5
    $region4: #{_lambda_.1} parent=1 // pred_region
      _
    $region5: #{_lambda_.1} parent=1 // pred_fallthru
      _
    // Predicated region
    $region6: #{_lambda_.1} parent=1 // pred_check
      _
    $region7: #{_lambda_.1} parent=1 // pred_check_branch
      %17 = sbr.rel (0) target = $region9
    $region8: #{_lambda_.1} parent=1 // pred_region
      _
    $region9: #{_lambda_.1} parent=1 // pred_fallthru
      _
    // Predicated region
    $region10: #{_lambda_.1} parent=1 // pred_check
      _
    $region11: #{_lambda_.1} parent=1 // pred_check_branch
      %19 = sbr.rel (0) target = $region13
    $region12: #{_lambda_.1} parent=1 // pred_region
      _
    $region13: #{_lambda_.1} parent=1 // pred_fallthru
      _
    // Predicated region
    $region14: #{_lambda_.1} parent=1 // pred_check
      _
    $region15: #{_lambda_.1} parent=1 // pred_check_branch
      %21 = sbr.rel (0) target = $region17
    $region16: #{_lambda_.1} parent=1 // pred_region
      %23 = vsyncadd [#allocation3], 0
      %s24 = sshll.u32 %s3, 4
      %s25 = int_to_ptr.hbm [resolvable:$true] %s24
      %s26 = sshll.u32 [#allocation2], 4
      %s27 = int_to_ptr.vmem [resolvable:$true] %s26
      %32 = dma.hbm_to_vmem [thread:$0]  %s25, 1024, %s27, [#allocation3], 64, 64, 4
    $region17: #{_lambda_.1} parent=1 // pred_fallthru
      _
    // Predicated region
    $region18: #{_lambda_.1} parent=1 // pred_check
      _
    $region19: #{_lambda_.1} parent=1 // pred_check_branch
      %34 = sbr.rel (0) target = $region21
    $region20: #{_lambda_.1} parent=1 // pred_region
      _
    $region21: #{_lambda_.1} parent=1 // pred_fallthru
      _
    // Predicated region
    $region22: #{_lambda_.1} parent=1 // pred_check
      _
    $region23: #{_lambda_.1} parent=1 // pred_check_branch
      %36 = sbr.rel (0) target = $region25
    $region24: #{_lambda_.1} parent=1 // pred_region
      %38 = vsyncadd [#allocation5], 0
      %s39 = sshll.u32 %s5, 4
      %s40 = int_to_ptr.hbm [resolvable:$true] %s39
      %s41 = sshll.u32 [#allocation4], 4
      %s42 = int_to_ptr.vmem [resolvable:$true] %s41
      %47 = dma.hbm_to_vmem [thread:$0]  %s40, 1024, %s42, [#allocation5], 64, 64, 4
    $region25: #{_lambda_.1} parent=1 // pred_fallthru
      _
    // Predicated region
    $region26: #{_lambda_.1} parent=1 // pred_check
      _
    $region27: #{_lambda_.1} parent=1 // pred_check_branch
      %49 = sbr.rel (0) target = $region29
    $region28: #{_lambda_.1} parent=1 // pred_region
      _
    $region29: #{_lambda_.1} parent=1 // pred_fallthru
      _
    // Predicated region
    $region30: #{_lambda_.1} parent=1 // pred_check
      _
    $region31: #{_lambda_.1} parent=1 // pred_check_branch
      %51 = sbr.rel (0) target = $region33
    $region32: #{_lambda_.1} parent=1 // pred_region
      %53 = dma.done [#allocation3], 1024
    $region33: #{_lambda_.1} parent=1 // pred_fallthru
      _
    // Predicated region
    $region34: #{_lambda_.1} parent=1 // pred_check
      _
    $region35: #{_lambda_.1} parent=1 // pred_check_branch
      %55 = sbr.rel (0) target = $region37
    $region36: #{_lambda_.1} parent=1 // pred_region
      %57 = dma.done [#allocation5], 1024
    $region37: #{_lambda_.1} parent=1 // pred_fallthru
      _
    %v59 = vld [vmem:[%s0] sm:$0xff]
    %v60 = vld [vmem:[%s0 + $0x8] sm:$0xff]
    %v61 = vpack.c.bf16 %v60, %v59
    %v62 = vld [vmem:[%s1] sm:$0xf]
    %v63 = vld [vmem:[%s1 + $0x4] sm:$0xf]
    %v64 = vld [vmem:[%s1 + $0x8] sm:$0xf]
    %v65 = vld [vmem:[%s1 + $0xc] sm:$0xf]
    %v66 = vld [vmem:[%s2] sm:$0x1]
    %v68 = vperm.slane %v66, 0
    %v74 = vunpack.c.l.b16 %v62
    %v75 = vunpack.c.l.b16 %v63
    %v76 = vunpack.c.l.b16 %v64
    %v77 = vunpack.c.l.b16 %v65
    %v78 = vpack.c.b16 %v75, %v74
    %v79 = vpack.c.b16 %v77, %v76
    %vm82 = vcmask 261120
    %v84 = vsel %vm82, %v61, 0
    %86 = vmatpush.bf16.msra.mxu0 0
    %87 = vmatpush.bf16.msra.mxu0 0
    %88 = vmatpush.bf16.msra.mxu0 0
    %89 = vmatpush.bf16.msra.mxu0 0
    %90 = vmatpush.bf16.msra.mxu0 0
    %91 = vmatpush.bf16.msra.mxu0 0
    %92 = vmatpush.bf16.msra.mxu0 %v79
    %93 = vmatpush.bf16.msra.mxu0 %v78
    %94 = vmatmul.bf16.gmra.mxu0 %v84
    %v95 = vpop.f32.mrf.mxu0
    %v96 = vadd.f32 %v68, %v95
    %v97 = vpop.f32.mrf.mxu0
    %v98 = vadd.f32 %v68, %v97
    %99 = vdwg.mxu0
    %v100 = vmax.f32 %v96, 0.0
    %v101 = vmax.f32 %v98, 0.0
    %v102 = vpack.c.bf16 %v101, %v100
    %v103 = vld [vmem:[#allocation2] sm:$0xf]
    %v104 = vld [vmem:[#allocation2 + $0x4] sm:$0xf]
    %v105 = vld [vmem:[#allocation2 + $0x8] sm:$0xf]
    %v106 = vld [vmem:[#allocation2 + $0xc] sm:$0xf]
    %v107 = vld [vmem:[#allocation2 + $0x10] sm:$0xf]
    %v108 = vld [vmem:[#allocation2 + $0x14] sm:$0xf]
    %v109 = vld [vmem:[#allocation2 + $0x18] sm:$0xf]
    %v110 = vld [vmem:[#allocation2 + $0x1c] sm:$0xf]
    %v111 = vld [vmem:[#allocation2 + $0x20] sm:$0xf]
    %v112 = vld [vmem:[#allocation2 + $0x24] sm:$0xf]
    %v113 = vld [vmem:[#allocation2 + $0x28] sm:$0xf]
    %v114 = vld [vmem:[#allocation2 + $0x2c] sm:$0xf]
    %v115 = vld [vmem:[#allocation2 + $0x30] sm:$0xf]
    %v116 = vld [vmem:[#allocation2 + $0x34] sm:$0xf]
    %v117 = vld [vmem:[#allocation2 + $0x38] sm:$0xf]
    %v118 = vld [vmem:[#allocation2 + $0x3c] sm:$0xf]
    %v119 = vld [vmem:[%s4] sm:$0x1]
    %v121 = vperm.slane %v119, 0
    %v139 = vunpack.c.l.b16 %v103
    %v140 = vunpack.c.l.b16 %v104
    %v141 = vunpack.c.l.b16 %v105
    %v142 = vunpack.c.l.b16 %v106
    %v143 = vunpack.c.l.b16 %v107
    %v144 = vunpack.c.l.b16 %v108
    %v145 = vunpack.c.l.b16 %v109
    %v146 = vunpack.c.l.b16 %v110
    %v147 = vunpack.c.l.b16 %v111
    %v148 = vunpack.c.l.b16 %v112
    %v149 = vunpack.c.l.b16 %v113
    %v150 = vunpack.c.l.b16 %v114
    %v151 = vunpack.c.l.b16 %v115
    %v152 = vunpack.c.l.b16 %v116
    %v153 = vunpack.c.l.b16 %v117
    %v154 = vunpack.c.l.b16 %v118
    %v155 = vpack.c.b16 %v140, %v139
    %v156 = vpack.c.b16 %v142, %v141
    %v157 = vpack.c.b16 %v144, %v143
    %v158 = vpack.c.b16 %v146, %v145
    %v159 = vpack.c.b16 %v148, %v147
    %v160 = vpack.c.b16 %v150, %v149
    %v161 = vpack.c.b16 %v152, %v151
    %v162 = vpack.c.b16 %v154, %v153
    %171 = vmatpush.bf16.msra.mxu0 %v162
    %172 = vmatpush.bf16.msra.mxu0 %v161
    %173 = vmatpush.bf16.msra.mxu0 %v160
    %174 = vmatpush.bf16.msra.mxu0 %v159
    %175 = vmatpush.bf16.msra.mxu0 %v158
    %176 = vmatpush.bf16.msra.mxu0 %v157
    %177 = vmatpush.bf16.msra.mxu0 %v156
    %178 = vmatpush.bf16.msra.mxu0 %v155
    %179 = vmatmul.bf16.gmra.mxu0 %v102
    %v180 = vpop.f32.mrf.mxu0
    %v181 = vadd.f32 %v121, %v180
    %v182 = vpop.f32.mrf.mxu0
    %v183 = vadd.f32 %v121, %v182
    %184 = vdwg.mxu0
    %v185 = vmax.f32 %v181, 0.0
    %v186 = vmax.f32 %v183, 0.0
    %v187 = vpack.c.bf16 %v186, %v185
    %v188 = vld [vmem:[#allocation4] sm:$0xf]
    %v189 = vld [vmem:[#allocation4 + $0x4] sm:$0xf]
    %v190 = vld [vmem:[#allocation4 + $0x8] sm:$0xf]
    %v191 = vld [vmem:[#allocation4 + $0xc] sm:$0xf]
    %v192 = vld [vmem:[#allocation4 + $0x10] sm:$0xf]
    %v193 = vld [vmem:[#allocation4 + $0x14] sm:$0xf]
    %v194 = vld [vmem:[#allocation4 + $0x18] sm:$0xf]
    %v195 = vld [vmem:[#allocation4 + $0x1c] sm:$0xf]
    %v196 = vld [vmem:[#allocation4 + $0x20] sm:$0xf]
    %v197 = vld [vmem:[#allocation4 + $0x24] sm:$0xf]
    %v198 = vld [vmem:[#allocation4 + $0x28] sm:$0xf]
    %v199 = vld [vmem:[#allocation4 + $0x2c] sm:$0xf]
    %v200 = vld [vmem:[#allocation4 + $0x30] sm:$0xf]
    %v201 = vld [vmem:[#allocation4 + $0x34] sm:$0xf]
    %v202 = vld [vmem:[#allocation4 + $0x38] sm:$0xf]
    %v203 = vld [vmem:[#allocation4 + $0x3c] sm:$0xf]
    %v204 = vld [vmem:[%s6] sm:$0x1]
    %v206 = vperm.slane %v204, 0
    %v224 = vunpack.c.l.b16 %v188
    %v225 = vunpack.c.l.b16 %v189
    %v226 = vunpack.c.l.b16 %v190
    %v227 = vunpack.c.l.b16 %v191
    %v228 = vunpack.c.l.b16 %v192
    %v229 = vunpack.c.l.b16 %v193
    %v230 = vunpack.c.l.b16 %v194
    %v231 = vunpack.c.l.b16 %v195
    %v232 = vunpack.c.l.b16 %v196
    %v233 = vunpack.c.l.b16 %v197
    %v234 = vunpack.c.l.b16 %v198
    %v235 = vunpack.c.l.b16 %v199
    %v236 = vunpack.c.l.b16 %v200
    %v237 = vunpack.c.l.b16 %v201
    %v238 = vunpack.c.l.b16 %v202
    %v239 = vunpack.c.l.b16 %v203
    %v240 = vpack.c.b16 %v225, %v224
    %v241 = vpack.c.b16 %v227, %v226
    %v242 = vpack.c.b16 %v229, %v228
    %v243 = vpack.c.b16 %v231, %v230
    %v244 = vpack.c.b16 %v233, %v232
    %v245 = vpack.c.b16 %v235, %v234
    %v246 = vpack.c.b16 %v237, %v236
    %v247 = vpack.c.b16 %v239, %v238
    %256 = vmatpush.bf16.msra.mxu0 %v247
    %257 = vmatpush.bf16.msra.mxu0 %v246
    %258 = vmatpush.bf16.msra.mxu0 %v245
    %259 = vmatpush.bf16.msra.mxu0 %v244
    %260 = vmatpush.bf16.msra.mxu0 %v243
    %261 = vmatpush.bf16.msra.mxu0 %v242
    %262 = vmatpush.bf16.msra.mxu0 %v241
    %263 = vmatpush.bf16.msra.mxu0 %v240
    %264 = vmatmul.bf16.gmra.mxu0 %v187
    %v265 = vpop.f32.mrf.mxu0
    %v266 = vadd.f32 %v206, %v265
    %v267 = vpop.f32.mrf.mxu0
    %v268 = vadd.f32 %v206, %v267
    %269 = vdwg.mxu0
    %v270 = vpack.c.bf16 %v266, %v266
    %v271 = vpack.c.bf16 %v268, %v268
    %272 = vst [vmem:[%s7] sm:$0xf] %v270
    %273 = vst [vmem:[%s7 + $0x4] sm:$0xf] %v271
    // Predicated region
    $region38: #{_lambda_.1} parent=1 // pred_check
      _
    $region39: #{_lambda_.1} parent=1 // pred_check_branch
      %275 = sbr.rel (0) target = $region41
    $region40: #{_lambda_.1} parent=1 // pred_region
      _
    $region41: #{_lambda_.1} parent=1 // pred_fallthru
      _
    // Predicated region
    $region42: #{_lambda_.1} parent=1 // pred_check
      _
    $region43: #{_lambda_.1} parent=1 // pred_check_branch
      %277 = sbr.rel (0) target = $region45
    $region44: #{_lambda_.1} parent=1 // pred_region
      _
    $region45: #{_lambda_.1} parent=1 // pred_fallthru
      _
    %278 = vsyncpa [#allocation3], 1
    %279 = vsyncpa [#allocation5], 1

</llo_original>
